<compile_context>
chip_gen: v6e
topology: v6e:2x2x1
jax: 0.10.0
libtpu: 0.0.40
codegen_flags: <defaults>
</compile_context>

<pallas_src>
import math

import jax
import jax.numpy as jnp
from jax.experimental import pallas as pl
from jax.experimental.pallas import tpu as pltpu


_GELU_C0 = math.sqrt(2.0 / math.pi)
_GELU_C1 = _GELU_C0 * 0.044715


def _gelu_tanh(x):
    # nn.GELU(approximate='tanh'): 0.5*x*(1 + tanh(sqrt(2/pi)*(x + 0.044715 x^3)))
    # written with a minimal op count: u = x*(c0 + c1*x^2)
    u = x * (_GELU_C0 + _GELU_C1 * (x * x))
    return 0.5 * x * (1.0 + jnp.tanh(u))


def mlp_kernel(x_ref, w1_ref, b1_ref, w2_ref, b2_ref, o_ref, acc_ref):
    # x_ref:  (TM, C)   bf16 input rows
    # w1_ref: (C, tH)   c_fc weight chunk, bf16 (in, out) layout
    # b1_ref: (1, tH)   c_fc bias chunk, f32
    # w2_ref: (tH, C)   c_proj weight chunk, bf16 (in, out) layout
    # b2_ref: (1, C)    c_proj bias, f32
    # o_ref:  (TM, C)   output tile
    # acc_ref:(TM, C)   f32 accumulator over the H (reduction) grid axis
    j = pl.program_id(1)

    @pl.when(j == 0)
    def _():
        acc_ref[...] = jnp.zeros_like(acc_ref)

    h = jnp.dot(x_ref[...], w1_ref[...], preferred_element_type=jnp.float32)
    h = _gelu_tanh(h + b1_ref[...])          # f32 elementwise (safe on v5e too)
    acc_ref[...] += jnp.dot(h.astype(jnp.bfloat16), w2_ref[...],
                            preferred_element_type=jnp.float32)

    @pl.when(j == pl.num_programs(1) - 1)
    def _():
        o_ref[...] = (acc_ref[...] + b2_ref[...]).astype(o_ref.dtype)


def _round_up(x, m):
    return ((x + m - 1) // m) * m


def mlp_forward(x, w_fc, b_fc, w_proj, b_proj, *, tile_m=None):
    """x: [B, T, C]. Weights in (in_features, out_features) layout. Returns [B, T, C]."""
    B, T, C = x.shape
    H = w_fc.shape[1]                       # 4 * C
    M = B * T
    out_dtype = x.dtype
    out_isz = jnp.dtype(out_dtype).itemsize

    # ---- generation-aware VMEM budget -------------------------------------
    try:
        vmem_cap = int(pltpu.get_tpu_info().vmem_capacity_bytes)
    except Exception:                        # conservative fallback
        vmem_cap = 64 << 20
    vmem_budget = max(vmem_cap - (8 << 20), 16 << 20)

    # ---- tile_m selection --------------------------------------------------
    if tile_m is None:
        tile_m = 512 if vmem_budget >= (100 << 20) else 256
    # clamp so the M grid has >= 2 steps (v7x megacore) and tiny M isn't padded
    tile_m = max(8, min(tile_m, _round_up(pl.cdiv(M, 2), 8)))

    def vmem_est(tm, th, resident):
        wbuf = 1 if resident else 2          # weight chunk buffer count
        est = (2 * tm * C * 2                # x tiles (2 bufs, bf16)
               + 2 * tm * C * out_isz        # out tiles (2 bufs)
               + wbuf * (C * th + th * C) * 2  # bf16 weight chunks
               + wbuf * (th + C) * 4         # biases
               + tm * C * 4                  # f32 accumulator scratch
               + tm * th * 4                 # f32 h intermediate
               + tm * th * 2)                # bf16 copy of h for 2nd matmul
        return int(est * 1.5) + (4 << 20)

    # ---- tile_h selection: resident if it fits, else stream H chunks ------
    candidates = [H] + [c for c in (4096, 2048, 1024, 512, 256, 128)
                        if c < H and H % c == 0]
    tile_h = None
    for th in candidates:
        if vmem_est(tile_m, th, resident=(th == H)) <= vmem_budget:
            tile_h = th
            break
    if tile_h is None:
        tile_h = candidates[-1]  # TODO(synk): also shrink tile_m here
    resident = (tile_h == H)
    num_h = H // tile_h

    # ---- ragged M: pad only when needed ------------------------------------
    num_m = pl.cdiv(M, tile_m)
    M_pad = num_m * tile_m
    x2d = x.reshape(M, C).astype(jnp.bfloat16)
    if M_pad != M:
        x2d = jnp.pad(x2d, ((0, M_pad - M), (0, 0)))

    # bf16 weights (MXU-native on all generations); f32 biases.
    w1 = w_fc.astype(jnp.bfloat16)
    w2 = w_proj.astype(jnp.bfloat16)
    b1 = b_fc.reshape(1, H).astype(jnp.float32)
    b2 = b_proj.reshape(1, C).astype(jnp.float32)

    vmem_limit = int(min(max(vmem_est(tile_m, tile_h, resident), 16 << 20),
                         vmem_budget))

    def wspec(shape, idx_map):
        if resident:  # block index constant across the grid -> single buffer
            return pl.BlockSpec(shape, idx_map, pipeline_mode=pl.Buffered(1))
        return pl.BlockSpec(shape, idx_map)

    cost = pl.CostEstimate(
        flops=4 * M * C * H,                 # two matmuls, 2*M*C*H flops each
        transcendentals=M * H,               # one tanh per hidden activation
        bytes_accessed=(M * C * 2            # x (bf16)
                        + M * C * out_isz    # out
                        + 2 * C * H * 2      # both bf16 weights
                        + (H + C) * 4),      # biases
    )

    out2d = pl.pallas_call(
        mlp_kernel,
        out_shape=jax.ShapeDtypeStruct((M_pad, C), out_dtype),
        grid_spec=pltpu.PrefetchScalarGridSpec(
            num_scalar_prefetch=0,
            grid=(num_m, num_h),
            in_specs=[
                pl.BlockSpec((tile_m, C), lambda i, j: (i, 0)),          # x tile
                wspec((C, tile_h), lambda i, j: (0, j)),                 # W_fc chunk
                wspec((1, tile_h), lambda i, j: (0, j)),                 # b_fc chunk
                wspec((tile_h, C), lambda i, j: (j, 0)),                 # W_proj chunk
                pl.BlockSpec((1, C), lambda i, j: (0, 0),
                             pipeline_mode=pl.Buffered(1)),              # b_proj
            ],
            out_specs=pl.BlockSpec((tile_m, C), lambda i, j: (i, 0)),
            scratch_shapes=[pltpu.VMEM((tile_m, C), jnp.float32)],
        ),
        compiler_params=pltpu.CompilerParams(
            dimension_semantics=("parallel", "arbitrary"),
            vmem_limit_bytes=vmem_limit),
        cost_estimate=cost,
    )(x2d, w1, b1, w2, b2)

    return out2d[:M].reshape(B, T, C)


def init_mlp_params(key, n_embd):
    """Deterministic init mimicking nn.Linear defaults (uniform +-1/sqrt(fan_in)).

    Returns weights in (in_features, out_features) layout.
    """
    h = 4 * n_embd
    k1, k2, k3, k4 = jax.random.split(key, 4)
    bound_fc = 1.0 / math.sqrt(n_embd)
    bound_proj = 1.0 / math.sqrt(h)
    w_fc = jax.random.uniform(k1, (n_embd, h), jnp.float32, -bound_fc, bound_fc)
    b_fc = jax.random.uniform(k2, (h,), jnp.float32, -bound_fc, bound_fc)
    w_proj = jax.random.uniform(k3, (h, n_embd), jnp.float32,
                                -bound_proj, bound_proj)
    b_proj = jax.random.uniform(k4, (n_embd,), jnp.float32,
                                -bound_proj, bound_proj)
    return w_fc, b_fc, w_proj, b_proj


if __name__ == "__main__":
    # Small GPT-like config: batch=2, seq=8, n_embd=128 (hidden = 512).
    # C is a multiple of 128 so loads/stores stay lane-dense.
    B, T, C = 2, 8, 128
    key = jax.random.PRNGKey(0)
    k_x, k_p = jax.random.split(key)

    x = jax.random.normal(k_x, (B, T, C), dtype=jnp.float32)
    w_fc, b_fc, w_proj, b_proj = init_mlp_params(k_p, C)

    out = mlp_forward(x, w_fc, b_fc, w_proj, b_proj)
    out = jax.block_until_ready(out)

    # Reference in plain JAX, mirroring the kernel's bf16 operand precision
    # (f32 accumulation), so the tolerance stays tight.
    x2 = x.reshape(-1, C)
    xb = x2.astype(jnp.bfloat16).astype(jnp.float32)
    w1f = w_fc.astype(jnp.bfloat16).astype(jnp.float32)
    w2f = w_proj.astype(jnp.bfloat16).astype(jnp.float32)
    h_ref = xb @ w1f + b_fc
    h_ref = _gelu_tanh(h_ref)
    h_ref = h_ref.astype(jnp.bfloat16).astype(jnp.float32)
    ref = (h_ref @ w2f + b_proj).reshape(B, T, C)

    assert out.shape == (B, T, C)
    assert jnp.allclose(out, ref, atol=2e-3, rtol=2e-3), "mismatch vs reference"

    print("KERNEL_OK")
</pallas_src>

<mosaic_0001>
module attributes {stable_mosaic.version = 11 : i64} {
  func.func @mlp_kernel(%arg0: i32, %arg1: i32, %arg2: memref<8x128xbf16, #tpu.memory_space<vmem>>, %arg3: memref<128x512xbf16, #tpu.memory_space<vmem>>, %arg4: memref<1x512xf32, #tpu.memory_space<vmem>>, %arg5: memref<512x128xbf16, #tpu.memory_space<vmem>>, %arg6: memref<1x128xf32, #tpu.memory_space<vmem>>, %arg7: memref<8x128xf32, #tpu.memory_space<vmem>>, %arg8: memref<8x128xf32, #tpu.memory_space<vmem>>) attributes {dimension_semantics = [#tpu.dimension_semantics<parallel>, #tpu.dimension_semantics<arbitrary>], iteration_bounds = array<i64: 2, 1>, scalar_prefetch = 0 : i64, scratch_operands = 1 : i64, tpu.core_type = #tpu.core_type<tc>, window_params = [{transform_indices = @transform_0, window_bounds = array<i64: 8, 128>}, {pipeline_mode = #tpu.pipeline_mode<synchronous>, transform_indices = @transform_1, window_bounds = array<i64: 128, 512>}, {pipeline_mode = #tpu.pipeline_mode<synchronous>, transform_indices = @transform_2, window_bounds = array<i64: 1, 512>}, {pipeline_mode = #tpu.pipeline_mode<synchronous>, transform_indices = @transform_3, window_bounds = array<i64: 512, 128>}, {pipeline_mode = #tpu.pipeline_mode<synchronous>, transform_indices = @transform_4, window_bounds = array<i64: 1, 128>}, {transform_indices = @transform_5, window_bounds = array<i64: 8, 128>}]} {
    %c0_i32 = arith.constant 0 : i32
    %0 = arith.cmpi eq, %arg1, %c0_i32 : i32
    %1 = arith.extui %0 : i1 to i32
    %c0_i32_0 = arith.constant 0 : i32
    %2 = arith.cmpi ne, %1, %c0_i32_0 : i32
    scf.if %2 {
      %cst_19 = arith.constant 0.000000e+00 : f32
      %30 = vector.broadcast %cst_19 : f32 to vector<8x128xf32>
      %c0_20 = arith.constant 0 : index
      %c0_21 = arith.constant 0 : index
      %31 = vector.load %arg8[%c0_20, %c0_21] : memref<8x128xf32, #tpu.memory_space<vmem>>, vector<8x128xf32>
      tpu.vector_store %arg8[%c0_20, %c0_21], %30 {strides = array<i32>} : memref<8x128xf32, #tpu.memory_space<vmem>>, vector<8x128xf32>,
    } else {
    }
    %c0 = arith.constant 0 : index
    %c0_1 = arith.constant 0 : index
    %3 = vector.load %arg2[%c0, %c0_1] : memref<8x128xbf16, #tpu.memory_space<vmem>>, vector<8x128xbf16>
    %c0_2 = arith.constant 0 : index
    %c0_3 = arith.constant 0 : index
    %4 = vector.load %arg3[%c0_2, %c0_3] : memref<128x512xbf16, #tpu.memory_space<vmem>>, vector<128x512xbf16>
    %cst = arith.constant dense<0.000000e+00> : vector<8x512xf32>
    %5 = tpu.matmul %3, %4, %cst {dimension_numbers = #tpu.dot_dimension_numbers<[1], [0], [0], [1], [0, 0, 1, 1], [], []>} : vector<8x128xbf16>, vector<128x512xbf16>, vector<8x512xf32> -> vector<8x512xf32>
    %c0_4 = arith.constant 0 : index
    %c0_5 = arith.constant 0 : index
    %6 = vector.load %arg4[%c0_4, %c0_5] : memref<1x512xf32, #tpu.memory_space<vmem>>, vector<1x512xf32>
    %7 = vector.broadcast %6 : vector<1x512xf32> to vector<8x512xf32>
    %8 = arith.addf %5, %7 : vector<8x512xf32>
    %9 = arith.mulf %8, %8 : vector<8x512xf32>
    %cst_6 = arith.constant 0.0356774069 : f32
    %10 = vector.broadcast %cst_6 : f32 to vector<8x512xf32>
    %11 = arith.mulf %10, %9 : vector<8x512xf32>
    %cst_7 = arith.constant 0.797884583 : f32
    %12 = vector.broadcast %cst_7 : f32 to vector<8x512xf32>
    %13 = arith.addf %12, %11 : vector<8x512xf32>
    %14 = arith.mulf %8, %13 : vector<8x512xf32>
    %cst_8 = arith.constant 5.000000e-01 : f32
    %15 = vector.broadcast %cst_8 : f32 to vector<8x512xf32>
    %16 = arith.mulf %15, %8 : vector<8x512xf32>
    %17 = math.tanh %14 : vector<8x512xf32>
    %cst_9 = arith.constant 1.000000e+00 : f32
    %18 = vector.broadcast %cst_9 : f32 to vector<8x512xf32>
    %19 = arith.addf %18, %17 : vector<8x512xf32>
    %20 = arith.mulf %16, %19 : vector<8x512xf32>
    %c0_10 = arith.constant 0 : index
    %c0_11 = arith.constant 0 : index
    %21 = vector.load %arg8[%c0_10, %c0_11] : memref<8x128xf32, #tpu.memory_space<vmem>>, vector<8x128xf32>
    %22 = arith.truncf %20 : vector<8x512xf32> to vector<8x512xbf16>
    %c0_12 = arith.constant 0 : index
    %c0_13 = arith.constant 0 : index
    %23 = vector.load %arg5[%c0_12, %c0_13] : memref<512x128xbf16, #tpu.memory_space<vmem>>, vector<512x128xbf16>
    %cst_14 = arith.constant dense<0.000000e+00> : vector<8x128xf32>
    %24 = tpu.matmul %22, %23, %cst_14 {dimension_numbers = #tpu.dot_dimension_numbers<[1], [0], [0], [1], [0, 0, 1, 1], [], []>} : vector<8x512xbf16>, vector<512x128xbf16>, vector<8x128xf32> -> vector<8x128xf32>
    %25 = arith.addf %21, %24 : vector<8x128xf32>
    %c0_15 = arith.constant 0 : index
    %c0_16 = arith.constant 0 : index
    %26 = vector.load %arg8[%c0_15, %c0_16] : memref<8x128xf32, #tpu.memory_space<vmem>>, vector<8x128xf32>
    tpu.vector_store %arg8[%c0_15, %c0_16], %25 {strides = array<i32>} : memref<8x128xf32, #tpu.memory_space<vmem>>, vector<8x128xf32>,
    %c0_i32_17 = arith.constant 0 : i32
    %27 = arith.cmpi eq, %arg1, %c0_i32_17 : i32
    %28 = arith.extui %27 : i1 to i32
    %c0_i32_18 = arith.constant 0 : i32
    %29 = arith.cmpi ne, %28, %c0_i32_18 : i32
    scf.if %29 {
      %c0_19 = arith.constant 0 : index
      %c0_20 = arith.constant 0 : index
      %30 = vector.load %arg8[%c0_19, %c0_20] : memref<8x128xf32, #tpu.memory_space<vmem>>, vector<8x128xf32>
      %c0_21 = arith.constant 0 : index
      %c0_22 = arith.constant 0 : index
      %31 = vector.load %arg6[%c0_21, %c0_22] : memref<1x128xf32, #tpu.memory_space<vmem>>, vector<1x128xf32>
      %32 = vector.broadcast %31 : vector<1x128xf32> to vector<8x128xf32>
      %33 = arith.addf %30, %32 : vector<8x128xf32>
      %c0_23 = arith.constant 0 : index
      %c0_24 = arith.constant 0 : index
      %34 = vector.load %arg7[%c0_23, %c0_24] : memref<8x128xf32, #tpu.memory_space<vmem>>, vector<8x128xf32>
      tpu.vector_store %arg7[%c0_23, %c0_24], %33 {strides = array<i32>} : memref<8x128xf32, #tpu.memory_space<vmem>>, vector<8x128xf32>,
    } else {
    }
    return
  }
  func.func @transform_0(%arg0: i32, %arg1: i32) -> (i32, i32) {
    %c0_i32 = arith.constant 0 : i32
    %c0_i32_0 = arith.constant 0 : i32
    return %arg0, %c0_i32 : i32, i32
  }
  func.func @transform_1(%arg0: i32, %arg1: i32) -> (i32, i32) {
    %c0_i32 = arith.constant 0 : i32
    %c0_i32_0 = arith.constant 0 : i32
    return %c0_i32, %arg1 : i32, i32
  }
  func.func @transform_2(%arg0: i32, %arg1: i32) -> (i32, i32) {
    %c0_i32 = arith.constant 0 : i32
    %c0_i32_0 = arith.constant 0 : i32
    return %c0_i32, %arg1 : i32, i32
  }
  func.func @transform_3(%arg0: i32, %arg1: i32) -> (i32, i32) {
    %c0_i32 = arith.constant 0 : i32
    %c0_i32_0 = arith.constant 0 : i32
    return %arg1, %c0_i32 : i32, i32
  }
  func.func @transform_4(%arg0: i32, %arg1: i32) -> (i32, i32) {
    %c0_i32 = arith.constant 0 : i32
    %c0_i32_0 = arith.constant 0 : i32
    %c0_i32_1 = arith.constant 0 : i32
    return %c0_i32, %c0_i32_0 : i32, i32
  }
  func.func @transform_5(%arg0: i32, %arg1: i32) -> (i32, i32) {
    %c0_i32 = arith.constant 0 : i32
    %c0_i32_0 = arith.constant 0 : i32
    return %arg0, %c0_i32 : i32, i32
  }
}

</mosaic_0001>

<llo_original>
// kernel: tpu_custom_call.1
$region0: #{tpu_custom_call.1}
  #allocation0 [shape = 'u32[]', space=smem, size = 0x4, offset = 0x4, fixed_abs, tag = 'smem constant byte address 0x4 - core index']
  #allocation1 [shape = 'u32[144,128]{1,0:T(1,128)}', space=vmem, size = 0x12000, scoped, tag = 'internal scratch']
  #allocation2 [shape = 'f32[8,128]{1,0:T(8,128)}', space=vmem, size = 0x1000, scoped, tag = 'scratch operand']
  %s0 = inlined_call_operand.hbm [shape: bf16[16,128], index: 0, kind: input, shape index: {}]
  %s1 = inlined_call_operand.hbm [shape: bf16[128,512], index: 1, kind: input, shape index: {}]
  %s2 = inlined_call_operand.hbm [shape: f32[1,512], index: 2, kind: input, shape index: {}]
  %s3 = inlined_call_operand.hbm [shape: bf16[512,128], index: 3, kind: input, shape index: {}]
  %s4 = inlined_call_operand.vmem [shape: f32[1,128], index: 4, kind: input, shape index: {}]
  %s5 = inlined_call_operand.hbm [shape: f32[16,128], index: 5, kind: output, shape index: {}]
  %s6 = sld [smem:[#allocation0]]
  $region77: #{tpu_custom_call.1} parent=0
    _
  %s8 = ssub.s32 1, %s6
  %s9 = scalar_select 0, %s8, %s6
  $region1: #{tpu_custom_call.1} parent=0
    #allocation3 [shape = 'u8[4096]{0}', space=vmem, size = 0x1000, scoped, tag = 'input window, operand 0']
    #allocation4 [shape = 's32[2]{0}', space=sflag, size = 0x8, scoped, tag = 'scoped memory for tpu_custom_call.1']
    #allocation5 [shape = 's32[2]{0}', space=sflag, size = 0x8, scoped, tag = 'scoped memory for tpu_custom_call.1']
    #allocation6 [shape = 'u8[131072]{0}', space=vmem, size = 0x20000, scoped, tag = 'input window, operand 1, single buffered']
    #allocation7 [shape = 's32[1]{0}', space=sflag, size = 0x4, scoped, tag = 'scoped memory for tpu_custom_call.1']
    #allocation8 [shape = 'u8[2048]{0}', space=vmem, size = 0x800, scoped, tag = 'input window, operand 2, single buffered']
    #allocation9 [shape = 'u8[131072]{0}', space=vmem, size = 0x20000, scoped, tag = 'input window, operand 3, single buffered']
    #allocation10 [shape = 's32[1]{0}', space=sflag, size = 0x4, scoped, tag = 'scoped memory for tpu_custom_call.1']
    #allocation11 [shape = 'u8[8192]{0}', space=vmem, size = 0x2000, scoped, tag = 'output window, operand 0']
    %10 = vsyncpa [#allocation4], 0
    %s11 = scalar_lea.sflag [#allocation4], 1
    %12 = vsyncpa %s11, 0
    %13 = vsyncpa [#allocation7], 0
    %14 = vsyncpa [#allocation10], 0
    %15 = vsyncpa [#allocation5], 0
    %s16 = scalar_lea.sflag [#allocation5], 1
    %17 = vsyncpa %s16, 0
    loop: start=0, step=1, limit=4
    $region2: #{tpu_custom_call.1} parent=1 // loop_pre_header
      _
    $region3: #{tpu_custom_call.1} parent=1 // loop_header
      %s19 = sphi 0, %s23
      %p20 = scmp.ge.s32.totalorder %s19, 4
      %s26 = sphi 0, %s38
      %s27 = sphi 0, %s34
      %s28 = sphi 0, %s26
      %s29 = sphi 0, %s27
      %s30 = sphi 0, %s28
      %s31 = sphi 0, %s29
      %s41 = sphi 0, %s43
      %s44 = sphi 0, %s41
      %s45 = sphi 0, %s44
      %s61 = sphi 0, %s45
      %s67 = sphi 0, %s69
      %s70 = sphi 0, %s67
      %s71 = sphi 0, %s70
      %s87 = sphi 0, %s71
      %s93 = sphi 0, %s95
      %s96 = sphi 0, %s93
      %s97 = sphi 0, %s96
      %s113 = sphi 0, %s97
      %s119 = sphi 0, %s121
      %s122 = sphi 0, %s119
      %s123 = sphi 0, %s122
      %s139 = sphi 0, %s123
      %s143 = sphi 0, %s143
      %s145 = sphi 0, %s143
      %s146 = sphi 0, %s145
      %s160 = sphi 0, %s146
      %s166 = sphi 0, %s168
      %s169 = sphi 0, %s166
      %s170 = sphi 0, %s169
      %s186 = sphi 0, %s170
    $region4: #{tpu_custom_call.1} parent=1 // loop_header_branch
      %22 = sbr.rel (%p20) target = $region8
    $region5: #{tpu_custom_call.1} parent=1 // loop_body
      %s24 = ssub.s32 %s19, 1
      %s25 = ssub.s32 %s19, 2
      %s32 = sadd.s32 1, %s27
      %p33 = scmp.ge.s32.totalorder %s32, 1
      %s34 = scalar_select %p33, 0, %s32
      %s35 = sadd.s32 1, %s26
      %s36 = scalar_select %p33, %s35, %s26
      %p37 = scmp.ge.s32.totalorder %s36, 2
      %s38 = scalar_select %p37, 0, %s36
      %s39 = ssub.s32 %s26, %s38
      %p40 = scmp.eq.s32.totalorder %s39, 0
      %s42 = sadd.s32 %s41, 1
      %s43 = scalar_select %p40, %s41, %s42
      %p46 = pneg %p40
      %p47 = scmp.eq.s32.totalorder %s19, 1
      %p48 = por %p46, %p47
      %p49 = scmp.ne.s32.totalorder %s41, %s44
      %p50 = scmp.eq.s32.totalorder %s19, 0
      %p51 = por %p49, %p50
      %p52 = scmp.ne.s32.totalorder %s41, %s44
      %p53 = scmp.eq.s32.totalorder %s24, 1
      %p54 = por %p52, %p53
      %p55 = scmp.ne.s32.totalorder %s44, %s45
      %p56 = scmp.eq.s32.totalorder %s24, 0
      %p57 = por %p55, %p56
      %p58 = scmp.ne.s32.totalorder %s44, %s45
      %p59 = scmp.eq.s32.totalorder %s25, 1
      %p60 = por %p58, %p59
      %p62 = scmp.ne.s32.totalorder %s45, %s61
      %p63 = scmp.eq.s32.totalorder %s25, 0
      %p64 = por %p62, %p63
      %s65 = ssub.s32 %s27, %s34
      %p66 = scmp.eq.s32.totalorder %s65, 0
      %s68 = sadd.s32 %s67, 1
      %s69 = scalar_select %p66, %s67, %s68
      %p72 = pneg %p66
      %p73 = scmp.eq.s32.totalorder %s19, 1
      %p74 = por %p72, %p73
      %p75 = scmp.ne.s32.totalorder %s67, %s70
      %p76 = scmp.eq.s32.totalorder %s19, 0
      %p77 = por %p75, %p76
      %p78 = scmp.ne.s32.totalorder %s67, %s70
      %p79 = scmp.eq.s32.totalorder %s24, 1
      %p80 = por %p78, %p79
      %p81 = scmp.ne.s32.totalorder %s70, %s71
      %p82 = scmp.eq.s32.totalorder %s24, 0
      %p83 = por %p81, %p82
      %p84 = scmp.ne.s32.totalorder %s70, %s71
      %p85 = scmp.eq.s32.totalorder %s25, 1
      %p86 = por %p84, %p85
      %p88 = scmp.ne.s32.totalorder %s71, %s87
      %p89 = scmp.eq.s32.totalorder %s25, 0
      %p90 = por %p88, %p89
      %s91 = ssub.s32 %s27, %s34
      %p92 = scmp.eq.s32.totalorder %s91, 0
      %s94 = sadd.s32 %s93, 1
      %s95 = scalar_select %p92, %s93, %s94
      %p98 = pneg %p92
      %p99 = scmp.eq.s32.totalorder %s19, 1
      %p100 = por %p98, %p99
      %p101 = scmp.ne.s32.totalorder %s93, %s96
      %p102 = scmp.eq.s32.totalorder %s19, 0
      %p103 = por %p101, %p102
      %p104 = scmp.ne.s32.totalorder %s93, %s96
      %p105 = scmp.eq.s32.totalorder %s24, 1
      %p106 = por %p104, %p105
      %p107 = scmp.ne.s32.totalorder %s96, %s97
      %p108 = scmp.eq.s32.totalorder %s24, 0
      %p109 = por %p107, %p108
      %p110 = scmp.ne.s32.totalorder %s96, %s97
      %p111 = scmp.eq.s32.totalorder %s25, 1
      %p112 = por %p110, %p111
      %p114 = scmp.ne.s32.totalorder %s97, %s113
      %p115 = scmp.eq.s32.totalorder %s25, 0
      %p116 = por %p114, %p115
      %s117 = ssub.s32 %s27, %s34
      %p118 = scmp.eq.s32.totalorder %s117, 0
      %s120 = sadd.s32 %s119, 1
      %s121 = scalar_select %p118, %s119, %s120
      %p124 = pneg %p118
      %p125 = scmp.eq.s32.totalorder %s19, 1
      %p126 = por %p124, %p125
      %p127 = scmp.ne.s32.totalorder %s119, %s122
      %p128 = scmp.eq.s32.totalorder %s19, 0
      %p129 = por %p127, %p128
      %p130 = scmp.ne.s32.totalorder %s119, %s122
      %p131 = scmp.eq.s32.totalorder %s24, 1
      %p132 = por %p130, %p131
      %p133 = scmp.ne.s32.totalorder %s122, %s123
      %p134 = scmp.eq.s32.totalorder %s24, 0
      %p135 = por %p133, %p134
      %p136 = scmp.ne.s32.totalorder %s122, %s123
      %p137 = scmp.eq.s32.totalorder %s25, 1
      %p138 = por %p136, %p137
      %p140 = scmp.ne.s32.totalorder %s123, %s139
      %p141 = scmp.eq.s32.totalorder %s25, 0
      %p142 = por %p140, %p141
      %s144 = sadd.s32 %s143, 1
      %p147 = scmp.eq.s32.totalorder %s19, 1
      %p148 = scmp.ne.s32.totalorder %s143, %s145
      %p149 = scmp.eq.s32.totalorder %s19, 0
      %p150 = por %p148, %p149
      %p151 = scmp.ne.s32.totalorder %s143, %s145
      %p152 = scmp.eq.s32.totalorder %s24, 1
      %p153 = por %p151, %p152
      %p154 = scmp.ne.s32.totalorder %s145, %s146
      %p155 = scmp.eq.s32.totalorder %s24, 0
      %p156 = por %p154, %p155
      %p157 = scmp.ne.s32.totalorder %s145, %s146
      %p158 = scmp.eq.s32.totalorder %s25, 1
      %p159 = por %p157, %p158
      %p161 = scmp.ne.s32.totalorder %s146, %s160
      %p162 = scmp.eq.s32.totalorder %s25, 0
      %p163 = por %p161, %p162
      %s164 = ssub.s32 %s26, %s38
      %p165 = scmp.eq.s32.totalorder %s164, 0
      %s167 = sadd.s32 %s166, 1
      %s168 = scalar_select %p165, %s166, %s167
      %p171 = pneg %p165
      %p172 = scmp.eq.s32.totalorder %s19, 1
      %p173 = por %p171, %p172
      %p174 = scmp.ne.s32.totalorder %s166, %s169
      %p175 = scmp.eq.s32.totalorder %s19, 0
      %p176 = por %p174, %p175
      %p177 = scmp.ne.s32.totalorder %s166, %s169
      %p178 = scmp.eq.s32.totalorder %s24, 1
      %p179 = por %p177, %p178
      %p180 = scmp.ne.s32.totalorder %s169, %s170
      %p181 = scmp.eq.s32.totalorder %s24, 0
      %p182 = por %p180, %p181
      %p183 = scmp.ne.s32.totalorder %s169, %s170
      %p184 = scmp.eq.s32.totalorder %s25, 1
      %p185 = por %p183, %p184
      %p187 = scmp.ne.s32.totalorder %s170, %s186
      %p188 = scmp.eq.s32.totalorder %s25, 0
      %p189 = por %p187, %p188
      %p190 = scmp.le.s32.totalorder 1, %s19
      %p191 = scmp.lt.s32.totalorder %s19, 3
      %p192 = pnand %p190, %p191
      %p193 = pneg %p192
      // Predicated region
      $region9: #{tpu_custom_call.1} parent=5 // pred_check
        _
      $region10: #{tpu_custom_call.1} parent=5 // pred_check_branch
        %195 = sbr.rel (%p192) target = $region12
      $region11: #{tpu_custom_call.1} parent=5 // pred_region
        %s196 = ssub.s32 %s19, 1
        // Predicated region
        $region13: #{tpu_custom_call.1} parent=11 // pred_check
          %p197 = pneg %p83
        $region14: #{tpu_custom_call.1} parent=11 // pred_check_branch
          %199 = sbr.rel (%p197) target = $region16
        $region15: #{tpu_custom_call.1} parent=11 // pred_region
          %s200 = smul.u32 4, %s29
          %s202 = ssub.s32 4096, 4096
          %203 = vsyncadd [#allocation7], %s202
          %s204 = smul.addr %s200, 64
          %s205 = scalar_lea.hbm %s1, %s204
          %s206 = sshll.u32 [#allocation6], 4
          %s207 = int_to_ptr.vmem [resolvable:$true] %s206
          %212 = dma.hbm_to_vmem [thread:$0]  %s205, 4096, %s207, [#allocation7], 256, 256, 16
        $region16: #{tpu_custom_call.1} parent=11 // pred_fallthru
          _
        // Predicated region
        $region17: #{tpu_custom_call.1} parent=11 // pred_check
          %p213 = pneg %p109
        $region18: #{tpu_custom_call.1} parent=11 // pred_check_branch
          %215 = sbr.rel (%p213) target = $region20
        $region19: #{tpu_custom_call.1} parent=11 // pred_region
          %s216 = smul.u32 4, %s29
          %s218 = ssub.s32 64, 64
          %219 = vsyncadd [#allocation7], %s218
          %s220 = smul.addr %s216, 16
          %s221 = scalar_lea.hbm %s2, %s220
          %s223 = sshll.u32 [#allocation8], 4
          %s224 = int_to_ptr.vmem [resolvable:$true] %s223
          %226 = dma.hbm_to_vmem [thread:$0]  %s221, 64, %s224, [#allocation7]
        $region20: #{tpu_custom_call.1} parent=11 // pred_fallthru
          _
        // Predicated region
        $region21: #{tpu_custom_call.1} parent=11 // pred_check
          %p227 = pneg %p135
        $region22: #{tpu_custom_call.1} parent=11 // pred_check_branch
          %229 = sbr.rel (%p227) target = $region24
        $region23: #{tpu_custom_call.1} parent=11 // pred_region
          %s230 = smul.u32 64, %s29
          %s232 = ssub.s32 4096, 4096
          %233 = vsyncadd [#allocation10], %s232
          %s234 = smul.addr %s230, 64
          %s235 = scalar_lea.hbm %s3, %s234
          %s236 = sshll.u32 [#allocation9], 4
          %s237 = int_to_ptr.vmem [resolvable:$true] %s236
          %242 = dma.hbm_to_vmem [thread:$0]  %s235, 4096, %s237, [#allocation10], 64, 64, 4
        $region24: #{tpu_custom_call.1} parent=11 // pred_fallthru
          _
        // Predicated region
        $region25: #{tpu_custom_call.1} parent=11 // pred_check
          %p243 = pneg %p156
        $region26: #{tpu_custom_call.1} parent=11 // pred_check_branch
          %245 = sbr.rel (%p243) target = $region28
        $region27: #{tpu_custom_call.1} parent=11 // pred_region
          _
        $region28: #{tpu_custom_call.1} parent=11 // pred_fallthru
          _
      $region12: #{tpu_custom_call.1} parent=5 // pred_fallthru
        _
      %p246 = scmp.lt.s32.totalorder %s19, 2
      // Predicated region
      $region29: #{tpu_custom_call.1} parent=5 // pred_check
        %p247 = pneg %p246
      $region30: #{tpu_custom_call.1} parent=5 // pred_check_branch
        %249 = sbr.rel (%p247) target = $region32
      $region31: #{tpu_custom_call.1} parent=5 // pred_region
        // Predicated region
        $region33: #{tpu_custom_call.1} parent=31 // pred_check
          %p250 = pneg %p51
        $region34: #{tpu_custom_call.1} parent=31 // pred_check_branch
          %252 = sbr.rel (%p250) target = $region36
        $region35: #{tpu_custom_call.1} parent=31 // pred_region
          %s253 = sand.u32 %s41, 1
          %s254 = scalar_lea.sflag [#allocation4], %s253
          %s255 = sand.u32 %s41, 1
          %s256 = smul.addr %s255, 4
          %s257 = scalar_lea.vmem [#allocation3], %s256
          %s259 = ssub.s32 64, 64
          %260 = vsyncadd %s254, %s259
          %s261 = smul.addr %s26, 64
          %s262 = scalar_lea.hbm %s0, %s261
          %s264 = sshll.u32 %s257, 4
          %s265 = int_to_ptr.vmem [resolvable:$true] %s264
          %267 = dma.hbm_to_vmem [thread:$0]  %s262, 64, %s265, %s254
        $region36: #{tpu_custom_call.1} parent=31 // pred_fallthru
          _
      $region32: #{tpu_custom_call.1} parent=5 // pred_fallthru
        _
      %p268 = scmp.le.s32.totalorder 1, %s19
      %p269 = scmp.lt.s32.totalorder %s19, 3
      %p270 = pnand %p268, %p269
      %p271 = pneg %p270
      // Predicated region
      $region37: #{tpu_custom_call.1} parent=5 // pred_check
        _
      $region38: #{tpu_custom_call.1} parent=5 // pred_check_branch
        %273 = sbr.rel (%p270) target = $region40
      $region39: #{tpu_custom_call.1} parent=5 // pred_region
        %s274 = ssub.s32 %s19, 1
        %s275 = sand.u32 %s44, 1
        %s276 = scalar_lea.sflag [#allocation4], %s275
        %s277 = sand.u32 %s44, 1
        %s278 = smul.addr %s277, 4
        %s279 = scalar_lea.vmem [#allocation3], %s278
        // Predicated region
        $region41: #{tpu_custom_call.1} parent=39 // pred_check
          %p280 = pneg %p57
        $region42: #{tpu_custom_call.1} parent=39 // pred_check_branch
          %282 = sbr.rel (%p280) target = $region44
        $region43: #{tpu_custom_call.1} parent=39 // pred_region
          %283 = dma.done %s276, 64
        $region44: #{tpu_custom_call.1} parent=39 // pred_fallthru
          _
        // Predicated region
        $region45: #{tpu_custom_call.1} parent=39 // pred_check
          %p284 = pneg %p83
        $region46: #{tpu_custom_call.1} parent=39 // pred_check_branch
          %286 = sbr.rel (%p284) target = $region48
        $region47: #{tpu_custom_call.1} parent=39 // pred_region
          %287 = dma.done [#allocation7], 4096
        $region48: #{tpu_custom_call.1} parent=39 // pred_fallthru
          _
        // Predicated region
        $region49: #{tpu_custom_call.1} parent=39 // pred_check
          %p288 = pneg %p109
        $region50: #{tpu_custom_call.1} parent=39 // pred_check_branch
          %290 = sbr.rel (%p288) target = $region52
        $region51: #{tpu_custom_call.1} parent=39 // pred_region
          %291 = dma.done [#allocation7], 64
        $region52: #{tpu_custom_call.1} parent=39 // pred_fallthru
          _
        // Predicated region
        $region53: #{tpu_custom_call.1} parent=39 // pred_check
          %p292 = pneg %p135
        $region54: #{tpu_custom_call.1} parent=39 // pred_check_branch
          %294 = sbr.rel (%p292) target = $region56
        $region55: #{tpu_custom_call.1} parent=39 // pred_region
          %295 = dma.done [#allocation10], 4096
        $region56: #{tpu_custom_call.1} parent=39 // pred_fallthru
          _
        %s296 = sand.u32 %s44, 1
        %s297 = scalar_lea.sflag [#allocation4], %s296
        %s298 = sand.u32 %s44, 1
        %s299 = smul.addr %s298, 4
        %s300 = scalar_lea.vmem [#allocation3], %s299
        %p301 = pneg %p57
        %p302 = pneg %p54
        %p303 = pneg %p83
        %p304 = pneg %p80
        %p305 = pneg %p109
        %p306 = pneg %p106
        %p307 = pneg %p135
        %p308 = pneg %p132
        %p309 = pneg %p156
        %p310 = pneg %p153
        %p311 = pneg %p182
        %p312 = pneg %p179
        %s313 = sand.u32 %s169, 1
        %s314 = scalar_lea.sflag [#allocation5], %s313
        %s315 = sand.u32 %s169, 1
        %s316 = smul.addr %s315, 8
        %s317 = scalar_lea.vmem [#allocation11], %s316
        %s318 = smul.u32 4, %s29
        %s319 = smul.u32 4, %s29
        %s320 = smul.u32 64, %s29
        %p322 = scmp.eq.s32.totalorder %s29, 0
        // Predicated region
        $region57: #{tpu_custom_call.1} parent=39 // pred_check
          %p323 = pneg %p322
        $region58: #{tpu_custom_call.1} parent=39 // pred_check_branch
          %325 = sbr.rel (%p323) target = $region60
        $region59: #{tpu_custom_call.1} parent=39 // pred_region
          %326 = vst [vmem:[#allocation2] sm:$0xff] 0.0
        $region60: #{tpu_custom_call.1} parent=39 // pred_fallthru
          _
        %v327 = vld [vmem:[%s279] sm:$0xf]
        %v328 = vld [vmem:[#allocation6] sm:$0xff]
        %v329 = vld [vmem:[#allocation6 + $0x8] sm:$0xff]
        %v330 = vld [vmem:[#allocation6 + $0x10] sm:$0xff]
        %v331 = vld [vmem:[#allocation6 + $0x18] sm:$0xff]
        %v332 = vld [vmem:[#allocation6 + $0x20] sm:$0xff]
        %v333 = vld [vmem:[#allocation6 + $0x28] sm:$0xff]
        %v334 = vld [vmem:[#allocation6 + $0x30] sm:$0xff]
        %v335 = vld [vmem:[#allocation6 + $0x38] sm:$0xff]
        %v336 = vld [vmem:[#allocation6 + $0x40] sm:$0xff]
        %v337 = vld [vmem:[#allocation6 + $0x48] sm:$0xff]
        %v338 = vld [vmem:[#allocation6 + $0x50] sm:$0xff]
        %v339 = vld [vmem:[#allocation6 + $0x58] sm:$0xff]
        %v340 = vld [vmem:[#allocation6 + $0x60] sm:$0xff]
        %v341 = vld [vmem:[#allocation6 + $0x68] sm:$0xff]
        %v342 = vld [vmem:[#allocation6 + $0x70] sm:$0xff]
        %v343 = vld [vmem:[#allocation6 + $0x78] sm:$0xff]
        %v344 = vld [vmem:[#allocation6 + $0x80] sm:$0xff]
        %v345 = vld [vmem:[#allocation6 + $0x88] sm:$0xff]
        %v346 = vld [vmem:[#allocation6 + $0x90] sm:$0xff]
        %v347 = vld [vmem:[#allocation6 + $0x98] sm:$0xff]
        %v348 = vld [vmem:[#allocation6 + $0xa0] sm:$0xff]
        %v349 = vld [vmem:[#allocation6 + $0xa8] sm:$0xff]
        %v350 = vld [vmem:[#allocation6 + $0xb0] sm:$0xff]
        %v351 = vld [vmem:[#allocation6 + $0xb8] sm:$0xff]
        %v352 = vld [vmem:[#allocation6 + $0xc0] sm:$0xff]
        %v353 = vld [vmem:[#allocation6 + $0xc8] sm:$0xff]
        %v354 = vld [vmem:[#allocation6 + $0xd0] sm:$0xff]
        %v355 = vld [vmem:[#allocation6 + $0xd8] sm:$0xff]
        %v356 = vld [vmem:[#allocation6 + $0xe0] sm:$0xff]
        %v357 = vld [vmem:[#allocation6 + $0xe8] sm:$0xff]
        %v358 = vld [vmem:[#allocation6 + $0xf0] sm:$0xff]
        %v359 = vld [vmem:[#allocation6 + $0xf8] sm:$0xff]
        %v360 = vld [vmem:[#allocation8] sm:$0xf]
        %v362 = vlaneseq
        %v363 = vshrl.u32 %v362, 7
        %v364 = vsub.s32 0, %v363
        %v365 = vrot.slane %v360, %v364
        %v366 = vlaneseq
        %v367 = vshrl.u32 %v366, 7
        %v368 = vsub.s32 1, %v367
        %v369 = vrot.slane %v360, %v368
        %v370 = vlaneseq
        %v371 = vshrl.u32 %v370, 7
        %v372 = vsub.s32 2, %v371
        %v373 = vrot.slane %v360, %v372
        %v374 = vlaneseq
        %v375 = vshrl.u32 %v374, 7
        %v376 = vsub.s32 3, %v375
        %v377 = vrot.slane %v360, %v376
        %v414 = vunpack.c.l.b16 %v328
        %v415 = vunpack.c.h.b16 %v328
        %v416 = vunpack.c.l.b16 %v329
        %v417 = vunpack.c.h.b16 %v329
        %v418 = vunpack.c.l.b16 %v330
        %v419 = vunpack.c.h.b16 %v330
        %v420 = vunpack.c.l.b16 %v331
        %v421 = vunpack.c.h.b16 %v331
        %v422 = vunpack.c.l.b16 %v332
        %v423 = vunpack.c.h.b16 %v332
        %v424 = vunpack.c.l.b16 %v333
        %v425 = vunpack.c.h.b16 %v333
        %v426 = vunpack.c.l.b16 %v334
        %v427 = vunpack.c.h.b16 %v334
        %v428 = vunpack.c.l.b16 %v335
        %v429 = vunpack.c.h.b16 %v335
        %v430 = vunpack.c.l.b16 %v336
        %v431 = vunpack.c.h.b16 %v336
        %v432 = vunpack.c.l.b16 %v337
        %v433 = vunpack.c.h.b16 %v337
        %v434 = vunpack.c.l.b16 %v338
        %v435 = vunpack.c.h.b16 %v338
        %v436 = vunpack.c.l.b16 %v339
        %v437 = vunpack.c.h.b16 %v339
        %v438 = vunpack.c.l.b16 %v340
        %v439 = vunpack.c.h.b16 %v340
        %v440 = vunpack.c.l.b16 %v341
        %v441 = vunpack.c.h.b16 %v341
        %v442 = vunpack.c.l.b16 %v342
        %v443 = vunpack.c.h.b16 %v342
        %v444 = vunpack.c.l.b16 %v343
        %v445 = vunpack.c.h.b16 %v343
        %v446 = vunpack.c.l.b16 %v344
        %v447 = vunpack.c.h.b16 %v344
        %v448 = vunpack.c.l.b16 %v345
        %v449 = vunpack.c.h.b16 %v345
        %v450 = vunpack.c.l.b16 %v346
        %v451 = vunpack.c.h.b16 %v346
        %v452 = vunpack.c.l.b16 %v347
        %v453 = vunpack.c.h.b16 %v347
        %v454 = vunpack.c.l.b16 %v348
        %v455 = vunpack.c.h.b16 %v348
        %v456 = vunpack.c.l.b16 %v349
        %v457 = vunpack.c.h.b16 %v349
        %v458 = vunpack.c.l.b16 %v350
        %v459 = vunpack.c.h.b16 %v350
        %v460 = vunpack.c.l.b16 %v351
        %v461 = vunpack.c.h.b16 %v351
        %v462 = vunpack.c.l.b16 %v352
        %v463 = vunpack.c.h.b16 %v352
        %v464 = vunpack.c.l.b16 %v353
        %v465 = vunpack.c.h.b16 %v353
        %v466 = vunpack.c.l.b16 %v354
        %v467 = vunpack.c.h.b16 %v354
        %v468 = vunpack.c.l.b16 %v355
        %v469 = vunpack.c.h.b16 %v355
        %v470 = vunpack.c.l.b16 %v356
        %v471 = vunpack.c.h.b16 %v356
        %v472 = vunpack.c.l.b16 %v357
        %v473 = vunpack.c.h.b16 %v357
        %v474 = vunpack.c.l.b16 %v358
        %v475 = vunpack.c.h.b16 %v358
        %v476 = vunpack.c.l.b16 %v359
        %v477 = vunpack.c.h.b16 %v359
        %v478 = vpack.c.b16 %v418, %v414
        %v479 = vpack.c.b16 %v419, %v415
        %v480 = vpack.c.b16 %v420, %v416
        %v481 = vpack.c.b16 %v421, %v417
        %v482 = vpack.c.b16 %v426, %v422
        %v483 = vpack.c.b16 %v427, %v423
        %v484 = vpack.c.b16 %v428, %v424
        %v485 = vpack.c.b16 %v429, %v425
        %v486 = vpack.c.b16 %v434, %v430
        %v487 = vpack.c.b16 %v435, %v431
        %v488 = vpack.c.b16 %v436, %v432
        %v489 = vpack.c.b16 %v437, %v433
        %v490 = vpack.c.b16 %v442, %v438
        %v491 = vpack.c.b16 %v443, %v439
        %v492 = vpack.c.b16 %v444, %v440
        %v493 = vpack.c.b16 %v445, %v441
        %v494 = vpack.c.b16 %v450, %v446
        %v495 = vpack.c.b16 %v451, %v447
        %v496 = vpack.c.b16 %v452, %v448
        %v497 = vpack.c.b16 %v453, %v449
        %v498 = vpack.c.b16 %v458, %v454
        %v499 = vpack.c.b16 %v459, %v455
        %v500 = vpack.c.b16 %v460, %v456
        %v501 = vpack.c.b16 %v461, %v457
        %v502 = vpack.c.b16 %v466, %v462
        %v503 = vpack.c.b16 %v467, %v463
        %v504 = vpack.c.b16 %v468, %v464
        %v505 = vpack.c.b16 %v469, %v465
        %v506 = vpack.c.b16 %v474, %v470
        %v507 = vpack.c.b16 %v475, %v471
        %v508 = vpack.c.b16 %v476, %v472
        %v509 = vpack.c.b16 %v477, %v473
        %542 = vmatprep.subr.bf16.mxu0 %v507
        %543 = vmatpush1.bf16.msra.mxu0 %v506
        %544 = vmatprep.subr.bf16.mxu0 %v503
        %545 = vmatpush1.bf16.msra.mxu0 %v502
        %546 = vmatprep.subr.bf16.mxu0 %v499
        %547 = vmatpush1.bf16.msra.mxu0 %v498
        %548 = vmatprep.subr.bf16.mxu0 %v495
        %549 = vmatpush1.bf16.msra.mxu0 %v494
        %550 = vmatprep.subr.bf16.mxu0 %v491
        %551 = vmatpush1.bf16.msra.mxu0 %v490
        %552 = vmatprep.subr.bf16.mxu0 %v487
        %553 = vmatpush1.bf16.msra.mxu0 %v486
        %554 = vmatprep.subr.bf16.mxu0 %v483
        %555 = vmatpush1.bf16.msra.mxu0 %v482
        %556 = vmatprep.subr.bf16.mxu0 %v479
        %557 = vmatpush1.bf16.msra.mxu0 %v478
        %558 = vmatprep.subr.bf16.mxu0 0
        %559 = vmatpush2.bf16.msra.mxu0 0
        %560 = vmatprep.subr.bf16.mxu0 0
        %561 = vmatpush2.bf16.msra.mxu0 0
        %562 = vmatprep.subr.bf16.mxu0 0
        %563 = vmatpush2.bf16.msra.mxu0 0
        %564 = vmatprep.subr.bf16.mxu0 0
        %565 = vmatpush2.bf16.msra.mxu0 0
        %566 = vmatprep.subr.bf16.mxu0 0
        %567 = vmatpush2.bf16.msra.mxu0 0
        %568 = vmatprep.subr.bf16.mxu0 0
        %569 = vmatpush2.bf16.msra.mxu0 0
        %570 = vmatprep.subr.bf16.mxu0 0
        %571 = vmatpush2.bf16.msra.mxu0 0
        %572 = vmatprep.subr.bf16.mxu0 0
        %573 = vmatpush2.bf16.msra.mxu0 0
        %574 = vmatprep.mubr.bf16.mxu0 0
        %575 = vmatmul.mubr.bf16.gmra.mxu0 %v327
        %v576 = vpop.f32.mrf.mxu0
        %v577 = vadd.f32 %v365, %v576
        %v578 = vpop.f32.mrf.mxu0
        %v579 = vadd.f32 %v369, %v578
        %v580 = vpop.f32.mrf.mxu0
        %v581 = vpop.f32.mrf.mxu0
        %582 = vdwg.mxu0
        %583 = vmatprep.subr.bf16.mxu0 %v509
        %584 = vmatpush1.bf16.msra.mxu0 %v508
        %585 = vmatprep.subr.bf16.mxu0 %v505
        %586 = vmatpush1.bf16.msra.mxu0 %v504
        %587 = vmatprep.subr.bf16.mxu0 %v501
        %588 = vmatpush1.bf16.msra.mxu0 %v500
        %589 = vmatprep.subr.bf16.mxu0 %v497
        %590 = vmatpush1.bf16.msra.mxu0 %v496
        %591 = vmatprep.subr.bf16.mxu0 %v493
        %592 = vmatpush1.bf16.msra.mxu0 %v492
        %593 = vmatprep.subr.bf16.mxu0 %v489
        %594 = vmatpush1.bf16.msra.mxu0 %v488
        %595 = vmatprep.subr.bf16.mxu0 %v485
        %596 = vmatpush1.bf16.msra.mxu0 %v484
        %597 = vmatprep.subr.bf16.mxu0 %v481
        %598 = vmatpush1.bf16.msra.mxu0 %v480
        %599 = vmatprep.subr.bf16.mxu0 0
        %600 = vmatpush2.bf16.msra.mxu0 0
        %601 = vmatprep.subr.bf16.mxu0 0
        %602 = vmatpush2.bf16.msra.mxu0 0
        %603 = vmatprep.subr.bf16.mxu0 0
        %604 = vmatpush2.bf16.msra.mxu0 0
        %605 = vmatprep.subr.bf16.mxu0 0
        %606 = vmatpush2.bf16.msra.mxu0 0
        %607 = vmatprep.subr.bf16.mxu0 0
        %608 = vmatpush2.bf16.msra.mxu0 0
        %609 = vmatprep.subr.bf16.mxu0 0
        %610 = vmatpush2.bf16.msra.mxu0 0
        %611 = vmatprep.subr.bf16.mxu0 0
        %612 = vmatpush2.bf16.msra.mxu0 0
        %613 = vmatprep.subr.bf16.mxu0 0
        %614 = vmatpush2.bf16.msra.mxu0 0
        %615 = vmatprep.mubr.bf16.mxu0 0
        %616 = vmatmul.mubr.bf16.gmra.mxu0 %v327
        %v617 = vpop.f32.mrf.mxu0
        %v618 = vadd.f32 %v373, %v617
        %v619 = vpop.f32.mrf.mxu0
        %v620 = vadd.f32 %v377, %v619
        %v621 = vpop.f32.mrf.mxu0
        %v622 = vpop.f32.mrf.mxu0
        %623 = vdwg.mxu0
        %v624 = vmul.f32 %v577, %v577
        %v625 = vmul.f32 %v579, %v579
        %v626 = vmul.f32 %v618, %v618
        %v627 = vmul.f32 %v620, %v620
        %v628 = vmul.f32 %v624, 0.035677407
        %v629 = vmul.f32 %v625, 0.035677407
        %v630 = vmul.f32 %v626, 0.035677407
        %v631 = vmul.f32 %v627, 0.035677407
        %v632 = vadd.f32 %v628, 0.7978846
        %v633 = vadd.f32 %v629, 0.7978846
        %v634 = vadd.f32 %v630, 0.7978846
        %v635 = vadd.f32 %v631, 0.7978846
        %v636 = vmul.f32 %v577, %v632
        %v637 = vmul.f32 %v579, %v633
        %v638 = vmul.f32 %v618, %v634
        %v639 = vmul.f32 %v620, %v635
        %v640 = vmul.f32 %v577, 0.5
        %v641 = vmul.f32 %v579, 0.5
        %v642 = vmul.f32 %v618, 0.5
        %v643 = vmul.f32 %v620, 0.5
        %v644 = vtanh.pop %v636
        %v645 = vtanh.pop %v637
        %v646 = vtanh.pop %v638
        %v647 = vtanh.pop %v639
        %v648 = vadd.f32 %v644, 1.0
        %v649 = vadd.f32 %v645, 1.0
        %v650 = vadd.f32 %v646, 1.0
        %v651 = vadd.f32 %v647, 1.0
        %v652 = vmul.f32 %v640, %v648
        %v653 = vmul.f32 %v641, %v649
        %v654 = vmul.f32 %v642, %v650
        %v655 = vmul.f32 %v643, %v651
        %v656 = vld [vmem:[#allocation2] sm:$0xff]
        %v657 = vpack.c.bf16 %v652, %v652
        %v658 = vpack.c.bf16 %v653, %v653
        %v659 = vpack.c.bf16 %v654, %v654
        %v660 = vpack.c.bf16 %v655, %v655
        %v661 = vld [vmem:[#allocation9] sm:$0xf]
        %v662 = vld [vmem:[#allocation9 + $0x4] sm:$0xf]
        %v663 = vld [vmem:[#allocation9 + $0x8] sm:$0xf]
        %v664 = vld [vmem:[#allocation9 + $0xc] sm:$0xf]
        %v665 = vld [vmem:[#allocation9 + $0x10] sm:$0xf]
        %v666 = vld [vmem:[#allocation9 + $0x14] sm:$0xf]
        %v667 = vld [vmem:[#allocation9 + $0x18] sm:$0xf]
        %v668 = vld [vmem:[#allocation9 + $0x1c] sm:$0xf]
        %v669 = vld [vmem:[#allocation9 + $0x20] sm:$0xf]
        %v670 = vld [vmem:[#allocation9 + $0x24] sm:$0xf]
        %v671 = vld [vmem:[#allocation9 + $0x28] sm:$0xf]
        %v672 = vld [vmem:[#allocation9 + $0x2c] sm:$0xf]
        %v673 = vld [vmem:[#allocation9 + $0x30] sm:$0xf]
        %v674 = vld [vmem:[#allocation9 + $0x34] sm:$0xf]
        %v675 = vld [vmem:[#allocation9 + $0x38] sm:$0xf]
        %v676 = vld [vmem:[#allocation9 + $0x3c] sm:$0xf]
        %v677 = vld [vmem:[#allocation9 + $0x40] sm:$0xf]
        %v678 = vld [vmem:[#allocation9 + $0x44] sm:$0xf]
        %v679 = vld [vmem:[#allocation9 + $0x48] sm:$0xf]
        %v680 = vld [vmem:[#allocation9 + $0x4c] sm:$0xf]
        %v681 = vld [vmem:[#allocation9 + $0x50] sm:$0xf]
        %v682 = vld [vmem:[#allocation9 + $0x54] sm:$0xf]
        %v683 = vld [vmem:[#allocation9 + $0x58] sm:$0xf]
        %v684 = vld [vmem:[#allocation9 + $0x5c] sm:$0xf]
        %v685 = vld [vmem:[#allocation9 + $0x60] sm:$0xf]
        %v686 = vld [vmem:[#allocation9 + $0x64] sm:$0xf]
        %v687 = vld [vmem:[#allocation9 + $0x68] sm:$0xf]
        %v688 = vld [vmem:[#allocation9 + $0x6c] sm:$0xf]
        %v689 = vld [vmem:[#allocation9 + $0x70] sm:$0xf]
        %v690 = vld [vmem:[#allocation9 + $0x74] sm:$0xf]
        %v691 = vld [vmem:[#allocation9 + $0x78] sm:$0xf]
        %v692 = vld [vmem:[#allocation9 + $0x7c] sm:$0xf]
        %v693 = vld [vmem:[#allocation9 + $0x80] sm:$0xf]
        %v694 = vld [vmem:[#allocation9 + $0x84] sm:$0xf]
        %v695 = vld [vmem:[#allocation9 + $0x88] sm:$0xf]
        %v696 = vld [vmem:[#allocation9 + $0x8c] sm:$0xf]
        %v697 = vld [vmem:[#allocation9 + $0x90] sm:$0xf]
        %v698 = vld [vmem:[#allocation9 + $0x94] sm:$0xf]
        %v699 = vld [vmem:[#allocation9 + $0x98] sm:$0xf]
        %v700 = vld [vmem:[#allocation9 + $0x9c] sm:$0xf]
        %v701 = vld [vmem:[#allocation9 + $0xa0] sm:$0xf]
        %v702 = vld [vmem:[#allocation9 + $0xa4] sm:$0xf]
        %v703 = vld [vmem:[#allocation9 + $0xa8] sm:$0xf]
        %v704 = vld [vmem:[#allocation9 + $0xac] sm:$0xf]
        %v705 = vld [vmem:[#allocation9 + $0xb0] sm:$0xf]
        %v706 = vld [vmem:[#allocation9 + $0xb4] sm:$0xf]
        %v707 = vld [vmem:[#allocation9 + $0xb8] sm:$0xf]
        %v708 = vld [vmem:[#allocation9 + $0xbc] sm:$0xf]
        %v709 = vld [vmem:[#allocation9 + $0xc0] sm:$0xf]
        %v710 = vld [vmem:[#allocation9 + $0xc4] sm:$0xf]
        %v711 = vld [vmem:[#allocation9 + $0xc8] sm:$0xf]
        %v712 = vld [vmem:[#allocation9 + $0xcc] sm:$0xf]
        %v713 = vld [vmem:[#allocation9 + $0xd0] sm:$0xf]
        %v714 = vld [vmem:[#allocation9 + $0xd4] sm:$0xf]
        %v715 = vld [vmem:[#allocation9 + $0xd8] sm:$0xf]
        %v716 = vld [vmem:[#allocation9 + $0xdc] sm:$0xf]
        %v717 = vld [vmem:[#allocation9 + $0xe0] sm:$0xf]
        %v718 = vld [vmem:[#allocation9 + $0xe4] sm:$0xf]
        %v719 = vld [vmem:[#allocation9 + $0xe8] sm:$0xf]
        %v720 = vld [vmem:[#allocation9 + $0xec] sm:$0xf]
        %v721 = vld [vmem:[#allocation9 + $0xf0] sm:$0xf]
        %v722 = vld [vmem:[#allocation9 + $0xf4] sm:$0xf]
        %v723 = vld [vmem:[#allocation9 + $0xf8] sm:$0xf]
        %v724 = vld [vmem:[#allocation9 + $0xfc] sm:$0xf]
        %v789 = vunpack.c.l.b16 %v661
        %v790 = vunpack.c.l.b16 %v662
        %v791 = vunpack.c.l.b16 %v663
        %v792 = vunpack.c.l.b16 %v664
        %v793 = vunpack.c.l.b16 %v665
        %v794 = vunpack.c.l.b16 %v666
        %v795 = vunpack.c.l.b16 %v667
        %v796 = vunpack.c.l.b16 %v668
        %v797 = vunpack.c.l.b16 %v669
        %v798 = vunpack.c.l.b16 %v670
        %v799 = vunpack.c.l.b16 %v671
        %v800 = vunpack.c.l.b16 %v672
        %v801 = vunpack.c.l.b16 %v673
        %v802 = vunpack.c.l.b16 %v674
        %v803 = vunpack.c.l.b16 %v675
        %v804 = vunpack.c.l.b16 %v676
        %v805 = vunpack.c.l.b16 %v677
        %v806 = vunpack.c.l.b16 %v678
        %v807 = vunpack.c.l.b16 %v679
        %v808 = vunpack.c.l.b16 %v680
        %v809 = vunpack.c.l.b16 %v681
        %v810 = vunpack.c.l.b16 %v682
        %v811 = vunpack.c.l.b16 %v683
        %v812 = vunpack.c.l.b16 %v684
        %v813 = vunpack.c.l.b16 %v685
        %v814 = vunpack.c.l.b16 %v686
        %v815 = vunpack.c.l.b16 %v687
        %v816 = vunpack.c.l.b16 %v688
        %v817 = vunpack.c.l.b16 %v689
        %v818 = vunpack.c.l.b16 %v690
        %v819 = vunpack.c.l.b16 %v691
        %v820 = vunpack.c.l.b16 %v692
        %v821 = vunpack.c.l.b16 %v693
        %v822 = vunpack.c.l.b16 %v694
        %v823 = vunpack.c.l.b16 %v695
        %v824 = vunpack.c.l.b16 %v696
        %v825 = vunpack.c.l.b16 %v697
        %v826 = vunpack.c.l.b16 %v698
        %v827 = vunpack.c.l.b16 %v699
        %v828 = vunpack.c.l.b16 %v700
        %v829 = vunpack.c.l.b16 %v701
        %v830 = vunpack.c.l.b16 %v702
        %v831 = vunpack.c.l.b16 %v703
        %v832 = vunpack.c.l.b16 %v704
        %v833 = vunpack.c.l.b16 %v705
        %v834 = vunpack.c.l.b16 %v706
        %v835 = vunpack.c.l.b16 %v707
        %v836 = vunpack.c.l.b16 %v708
        %v837 = vunpack.c.l.b16 %v709
        %v838 = vunpack.c.l.b16 %v710
        %v839 = vunpack.c.l.b16 %v711
        %v840 = vunpack.c.l.b16 %v712
        %v841 = vunpack.c.l.b16 %v713
        %v842 = vunpack.c.l.b16 %v714
        %v843 = vunpack.c.l.b16 %v715
        %v844 = vunpack.c.l.b16 %v716
        %v845 = vunpack.c.l.b16 %v717
        %v846 = vunpack.c.l.b16 %v718
        %v847 = vunpack.c.l.b16 %v719
        %v848 = vunpack.c.l.b16 %v720
        %v849 = vunpack.c.l.b16 %v721
        %v850 = vunpack.c.l.b16 %v722
        %v851 = vunpack.c.l.b16 %v723
        %v852 = vunpack.c.l.b16 %v724
        %v853 = vpack.c.b16 %v790, %v789
        %v854 = vpack.c.b16 %v792, %v791
        %v855 = vpack.c.b16 %v794, %v793
        %v856 = vpack.c.b16 %v796, %v795
        %v857 = vpack.c.b16 %v798, %v797
        %v858 = vpack.c.b16 %v800, %v799
        %v859 = vpack.c.b16 %v802, %v801
        %v860 = vpack.c.b16 %v804, %v803
        %v861 = vpack.c.b16 %v806, %v805
        %v862 = vpack.c.b16 %v808, %v807
        %v863 = vpack.c.b16 %v810, %v809
        %v864 = vpack.c.b16 %v812, %v811
        %v865 = vpack.c.b16 %v814, %v813
        %v866 = vpack.c.b16 %v816, %v815
        %v867 = vpack.c.b16 %v818, %v817
        %v868 = vpack.c.b16 %v820, %v819
        %v869 = vpack.c.b16 %v822, %v821
        %v870 = vpack.c.b16 %v824, %v823
        %v871 = vpack.c.b16 %v826, %v825
        %v872 = vpack.c.b16 %v828, %v827
        %v873 = vpack.c.b16 %v830, %v829
        %v874 = vpack.c.b16 %v832, %v831
        %v875 = vpack.c.b16 %v834, %v833
        %v876 = vpack.c.b16 %v836, %v835
        %v877 = vpack.c.b16 %v838, %v837
        %v878 = vpack.c.b16 %v840, %v839
        %v879 = vpack.c.b16 %v842, %v841
        %v880 = vpack.c.b16 %v844, %v843
        %v881 = vpack.c.b16 %v846, %v845
        %v882 = vpack.c.b16 %v848, %v847
        %v883 = vpack.c.b16 %v850, %v849
        %v884 = vpack.c.b16 %v852, %v851
        %917 = vmatprep.subr.bf16.mxu0 0
        %918 = vmatpush1.bf16.msra.mxu0 %v860
        %919 = vmatprep.subr.bf16.mxu0 0
        %920 = vmatpush1.bf16.msra.mxu0 %v859
        %921 = vmatprep.subr.bf16.mxu0 0
        %922 = vmatpush1.bf16.msra.mxu0 %v858
        %923 = vmatprep.subr.bf16.mxu0 0
        %924 = vmatpush1.bf16.msra.mxu0 %v857
        %925 = vmatprep.subr.bf16.mxu0 0
        %926 = vmatpush1.bf16.msra.mxu0 %v856
        %927 = vmatprep.subr.bf16.mxu0 0
        %928 = vmatpush1.bf16.msra.mxu0 %v855
        %929 = vmatprep.subr.bf16.mxu0 0
        %930 = vmatpush1.bf16.msra.mxu0 %v854
        %931 = vmatprep.subr.bf16.mxu0 0
        %932 = vmatpush1.bf16.msra.mxu0 %v853
        %933 = vmatprep.subr.bf16.mxu0 0
        %934 = vmatpush2.bf16.msra.mxu0 %v868
        %935 = vmatprep.subr.bf16.mxu0 0
        %936 = vmatpush2.bf16.msra.mxu0 %v867
        %937 = vmatprep.subr.bf16.mxu0 0
        %938 = vmatpush2.bf16.msra.mxu0 %v866
        %939 = vmatprep.subr.bf16.mxu0 0
        %940 = vmatpush2.bf16.msra.mxu0 %v865
        %941 = vmatprep.subr.bf16.mxu0 0
        %942 = vmatpush2.bf16.msra.mxu0 %v864
        %943 = vmatprep.subr.bf16.mxu0 0
        %944 = vmatpush2.bf16.msra.mxu0 %v863
        %945 = vmatprep.subr.bf16.mxu0 0
        %946 = vmatpush2.bf16.msra.mxu0 %v862
        %947 = vmatprep.subr.bf16.mxu0 0
        %948 = vmatpush2.bf16.msra.mxu0 %v861
        %949 = vmatprep.mubr.bf16.mxu0 %v658
        %950 = vmatmul.mubr.bf16.gmra.mxu0 %v657
        %v951 = vpop.f32.mrf.mxu0
        %v952 = vadd.f32 0.0, %v951
        %v953 = vpop.f32.mrf.mxu0
        %v954 = vpop.f32.mrf.mxu0
        %v955 = vpop.f32.mrf.mxu0
        %956 = vdwg.mxu0
        %957 = vmatprep.subr.bf16.mxu0 0
        %958 = vmatpush1.bf16.msra.mxu0 %v876
        %959 = vmatprep.subr.bf16.mxu0 0
        %960 = vmatpush1.bf16.msra.mxu0 %v875
        %961 = vmatprep.subr.bf16.mxu0 0
        %962 = vmatpush1.bf16.msra.mxu0 %v874
        %963 = vmatprep.subr.bf16.mxu0 0
        %964 = vmatpush1.bf16.msra.mxu0 %v873
        %965 = vmatprep.subr.bf16.mxu0 0
        %966 = vmatpush1.bf16.msra.mxu0 %v872
        %967 = vmatprep.subr.bf16.mxu0 0
        %968 = vmatpush1.bf16.msra.mxu0 %v871
        %969 = vmatprep.subr.bf16.mxu0 0
        %970 = vmatpush1.bf16.msra.mxu0 %v870
        %971 = vmatprep.subr.bf16.mxu0 0
        %972 = vmatpush1.bf16.msra.mxu0 %v869
        %973 = vmatprep.subr.bf16.mxu0 0
        %974 = vmatpush2.bf16.msra.mxu0 %v884
        %975 = vmatprep.subr.bf16.mxu0 0
        %976 = vmatpush2.bf16.msra.mxu0 %v883
        %977 = vmatprep.subr.bf16.mxu0 0
        %978 = vmatpush2.bf16.msra.mxu0 %v882
        %979 = vmatprep.subr.bf16.mxu0 0
        %980 = vmatpush2.bf16.msra.mxu0 %v881
        %981 = vmatprep.subr.bf16.mxu0 0
        %982 = vmatpush2.bf16.msra.mxu0 %v880
        %983 = vmatprep.subr.bf16.mxu0 0
        %984 = vmatpush2.bf16.msra.mxu0 %v879
        %985 = vmatprep.subr.bf16.mxu0 0
        %986 = vmatpush2.bf16.msra.mxu0 %v878
        %987 = vmatprep.subr.bf16.mxu0 0
        %988 = vmatpush2.bf16.msra.mxu0 %v877
        %989 = vmatprep.mubr.bf16.mxu0 %v660
        %990 = vmatmul.mubr.bf16.gmra.mxu0 %v659
        %v991 = vpop.f32.mrf.mxu0
        %v992 = vadd.f32 %v952, %v991
        %v993 = vpop.f32.mrf.mxu0
        %v994 = vpop.f32.mrf.mxu0
        %v995 = vpop.f32.mrf.mxu0
        %996 = vdwg.mxu0
        %v997 = vadd.f32 %v656, %v992
        %998 = vst [vmem:[#allocation2] sm:$0xff] %v997
        // Predicated region
        $region61: #{tpu_custom_call.1} parent=39 // pred_check
          %p999 = pneg %p322
        $region62: #{tpu_custom_call.1} parent=39 // pred_check_branch
          %1001 = sbr.rel (%p999) target = $region64
        $region63: #{tpu_custom_call.1} parent=39 // pred_region
          %v1002 = vld [vmem:[#allocation2] sm:$0xff]
          %v1003 = vld [vmem:[%s4] sm:$0x1]
          %v1005 = vlaneseq
          %v1006 = vshrl.u32 %v1005, 7
          %v1007 = vsub.s32 0, %v1006
          %v1008 = vrot.slane %v1003, %v1007
          %v1010 = vadd.f32 %v1002, %v1008
          %1011 = vst [vmem:[%s317] sm:$0xff] %v1010
        $region64: #{tpu_custom_call.1} parent=39 // pred_fallthru
          _
        %s1012 = sand.u32 %s169, 1
        %s1013 = scalar_lea.sflag [#allocation5], %s1012
        %s1014 = sand.u32 %s169, 1
        %s1015 = smul.addr %s1014, 8
        %s1016 = scalar_lea.vmem [#allocation11], %s1015
        // Predicated region
        $region65: #{tpu_custom_call.1} parent=39 // pred_check
          %p1017 = pneg %p179
        $region66: #{tpu_custom_call.1} parent=39 // pred_check_branch
          %1019 = sbr.rel (%p1017) target = $region68
        $region67: #{tpu_custom_call.1} parent=39 // pred_region
          %s1021 = ssub.s32 128, 128
          %1022 = vsyncadd %s1013, %s1021
          %s1023 = smul.addr %s28, 128
          %s1024 = scalar_lea.hbm %s5, %s1023
          %s1026 = sshll.u32 %s1016, 4
          %s1027 = int_to_ptr.vmem [resolvable:$true] %s1026
          %1029 = dma.vmem_to_hbm [thread:$0]  %s1027, 128, %s1024, %s1013
        $region68: #{tpu_custom_call.1} parent=39 // pred_fallthru
          _
      $region40: #{tpu_custom_call.1} parent=5 // pred_fallthru
        _
      %p1030 = scmp.le.s32.totalorder 2, %s19
      // Predicated region
      $region69: #{tpu_custom_call.1} parent=5 // pred_check
        %p1031 = pneg %p1030
      $region70: #{tpu_custom_call.1} parent=5 // pred_check_branch
        %1033 = sbr.rel (%p1031) target = $region72
      $region71: #{tpu_custom_call.1} parent=5 // pred_region
        %s1034 = ssub.s32 %s19, 2
        // Predicated region
        $region73: #{tpu_custom_call.1} parent=71 // pred_check
          %p1035 = pneg %p185
        $region74: #{tpu_custom_call.1} parent=71 // pred_check_branch
          %1037 = sbr.rel (%p1035) target = $region76
        $region75: #{tpu_custom_call.1} parent=71 // pred_region
          %s1038 = sand.u32 %s170, 1
          %s1039 = scalar_lea.sflag [#allocation5], %s1038
          %s1040 = sand.u32 %s170, 1
          %s1041 = smul.addr %s1040, 8
          %s1042 = scalar_lea.vmem [#allocation11], %s1041
          %1043 = dma.done %s1039, 128
        $region76: #{tpu_custom_call.1} parent=71 // pred_fallthru
          _
      $region72: #{tpu_custom_call.1} parent=5 // pred_fallthru
        _
    $region6: #{tpu_custom_call.1} parent=1 // loop_footer
      %s23 = sadd.s32 1, %s19
    $region7: #{tpu_custom_call.1} parent=1 // loop_footer_branch
      %18 = sbr.rel target = $region3
    $region8: #{tpu_custom_call.1} parent=1 // loop_exit
      _
    %1044 = vsyncpa [#allocation4], 1
    %s1045 = scalar_lea.sflag [#allocation4], 1
    %1046 = vsyncpa %s1045, 1
    %1047 = vsyncpa [#allocation7], 1
    %1048 = vsyncpa [#allocation10], 1
    %1049 = vsyncpa [#allocation5], 1
    %s1050 = scalar_lea.sflag [#allocation5], 1
    %1051 = vsyncpa %s1050, 1

</llo_original>
